<compile_context>
chip_gen: v6e
topology: v6e:2x2x1
jax: 0.10.0
libtpu: 0.0.40
codegen_flags: <defaults>
</compile_context>

<pallas_src>
import jax
import jax.numpy as jnp
from jax.experimental import pallas as pl
from jax.experimental.pallas import tpu as pltpu


def _round_up(x, m):
    return -(-x // m) * m


def _sublanes(itemsize):
    # Sublane packing of the second-minor dim: 8 for f32, 16 for bf16, 32 i8.
    return max(8 * (4 // max(itemsize, 1)), 8)


def _spatial_attention_kernel(x_ref, w_ref, b_ref, o_ref):
    # x_ref: (1, C, TH, W) VMEM tile (input dtype)
    # w_ref: (C, 1, 1)     VMEM, f32 1x1-conv weight (constant across grid)
    # b_ref: (1, 1)        SMEM, f32 1x1-conv bias (pure scalar)
    # o_ref: (1, C, TH, W) VMEM tile (input dtype)
    x = x_ref[0]                                                  # (C, TH, W)
    w = w_ref[...]                                                # (C, 1, 1)
    # Channel reduction over the leading (untiled) axis: pure VPU f32 FMAs,
    # do NOT route through the MXU for a 1-row contraction.
    att = jnp.sum(x.astype(jnp.float32) * w, axis=0)              # (TH, W) f32
    att = att + b_ref[0, 0]
    # Cast once, then do the broadcasted multiply in the input dtype (bf16 on
    # v6e/v7x) to avoid a second full-tile f32 intermediate.
    o_ref[0] = x * att.astype(o_ref.dtype)


def _default_vmem_budget_bytes():
    """Generation-aware working-set budget (well under every scoped limit)."""
    phys = 64 * 1024 * 1024  # conservative default: v7x has the smallest VMEM
    try:
        info = pltpu.get_tpu_info()
        phys = int(getattr(info, "vmem_capacity_bytes", phys) or phys)
    except Exception:
        pass
    # ~1/8 of physical, clamped to [4 MiB, 12 MiB]:
    #   v5e/v6e (128 MiB)  -> 12 MiB;  v7x (64 MiB) -> 8 MiB.
    # Beyond ~512-1024 lanes per tile the HBM roofline gain is <2%, so there
    # is no reason to chase bigger tiles.
    return max(4 * 1024 * 1024, min(phys // 8, 12 * 1024 * 1024))


def _vmem_bytes(th, C, W, itemsize):
    """Estimated VMEM residency for one grid step (padded, double-buffered)."""
    lanes = _round_up(max(W, 1), 128)
    sub = _sublanes(itemsize)
    io = C * _round_up(max(th, 1), sub) * lanes * itemsize   # one (C,TH,W) buf
    att = _round_up(max(th, 1), 8) * lanes * 4               # f32 att temp
    slab = _round_up(max(th, 1), 8) * lanes * 4              # one f32 cast slab
    w_buf = 2 * C * 8 * 128 * 4                              # (C,1,1) f32, 2 bufs
    return 4 * io + att + slab + w_buf                       # 2 in + 2 out bufs


def _choose_tile_h(N, C, H, W, itemsize, vmem_budget_bytes):
    """Largest sublane-aligned H-tile that fits the budget, >=2 grid steps."""
    sub = _sublanes(itemsize)
    base = _vmem_bytes(0, C, W, itemsize)
    per_group = max(_vmem_bytes(sub, C, W, itemsize) - base, 1)
    max_groups = max((vmem_budget_bytes - base) // per_group, 1)
    th = int(min(max_groups * sub, _round_up(H, sub)))
    if th >= H:
        th = H  # full-extent block: always a legal layout

    # Guarantee >= 2 grid steps on the parallel axes so a v7x megacore can
    # split across its two TensorCores.  On 1-TC chips the extra step only
    # costs ~0.35us, which is noise for an HBM-bound kernel.
    steps = N * pl.cdiv(H, th)
    if steps < 2 and H > sub:
        th = _round_up(pl.cdiv(H, 2), sub)
    return th


def spatial_attention(x_nchw, weight, bias, *, vmem_budget_bytes=None,
                      donate_input=False):
    """x_nchw: (N, C, H, W); weight: (C,); bias: () -- Conv2d(C, 1, k=1) params."""
    N, C, H, W = x_nchw.shape
    dtype = x_nchw.dtype
    itemsize = jnp.dtype(dtype).itemsize
    if vmem_budget_bytes is None:
        vmem_budget_bytes = _default_vmem_budget_bytes()

    th = _choose_tile_h(N, C, H, W, itemsize, vmem_budget_bytes)

    w = weight.reshape(C, 1, 1).astype(jnp.float32)
    b = jnp.asarray(bias, jnp.float32).reshape(1, 1)

    # Scoped-VMEM limit consistent with the actual (padded) residency plus
    # headroom for compiler scratch.  Always <= 48 MiB, safe on v5e/v6e/v7x.
    est = _vmem_bytes(th, C, W, itemsize)
    vmem_limit = int(min(est * 3 // 2 + (4 << 20), 48 << 20))

    grid = (N, pl.cdiv(H, th))
    extra = {}
    if donate_input:
        # Safe for this per-block elementwise kernel (each block is fully read
        # into VMEM before writeback).  Only enable when the caller no longer
        # needs x (e.g. under jit with donate_argnums), otherwise XLA copies.
        extra["input_output_aliases"] = {0: 0}

    out = pl.pallas_call(
        _spatial_attention_kernel,
        out_shape=jax.ShapeDtypeStruct((N, C, H, W), dtype),
        grid_spec=pltpu.PrefetchScalarGridSpec(
            num_scalar_prefetch=0,
            grid=grid,
            in_specs=[
                pl.BlockSpec((1, C, th, W), lambda n, h: (n, 0, h, 0)),
                pl.BlockSpec((C, 1, 1), lambda n, h: (0, 0, 0)),
                pl.BlockSpec(memory_space=pltpu.MemorySpace.SMEM),
            ],
            out_specs=pl.BlockSpec((1, C, th, W), lambda n, h: (n, 0, h, 0)),
        ),
        compiler_params=pltpu.CompilerParams(
            dimension_semantics=("parallel", "parallel"),
            vmem_limit_bytes=vmem_limit,
        ),
        **extra,
    )(x_nchw, w, b)
    return out


def _reference(x_nchw, weight, bias):
    # pure-JAX reference of the PyTorch forward
    att = jnp.einsum("nchw,c->nhw", x_nchw.astype(jnp.float32),
                     weight.astype(jnp.float32)) + bias          # (N, H, W)
    return (x_nchw * att[:, None, :, :].astype(x_nchw.dtype)).astype(x_nchw.dtype)


if __name__ == "__main__":
    key = jax.random.PRNGKey(0)
    k_x, k_w, k_b = jax.random.split(key, 3)

    N, C, H, W = 2, 4, 16, 16
    x = jax.random.normal(k_x, (N, C, H, W), dtype=jnp.float32)

    # Deterministic synthetic Conv2d(C, 1, kernel_size=1) parameters
    # (kaiming-uniform-ish bound, purely for determinism — not a checkpoint).
    bound = 1.0 / (C ** 0.5)
    weight = jax.random.uniform(k_w, (C,), jnp.float32, -bound, bound)
    bias = jax.random.uniform(k_b, (), jnp.float32, -bound, bound)

    out = spatial_attention(x, weight, bias)
    out = jax.block_until_ready(out)

    ref = _reference(x, weight, bias)
    assert out.shape == (N, C, H, W)
    assert out.dtype == x.dtype
    assert jnp.allclose(out, ref, atol=1e-5, rtol=1e-5)

    print("KERNEL_OK")
</pallas_src>

<mosaic_0001>
module attributes {stable_mosaic.version = 11 : i64} {
  func.func @_spatial_attention_kernel(%arg0: i32, %arg1: i32, %arg2: memref<1x4x16x16xf32, #tpu.memory_space<vmem>>, %arg3: memref<4x1x1xf32, #tpu.memory_space<vmem>>, %arg4: memref<1x1xf32, #tpu.memory_space<smem>>, %arg5: memref<1x4x16x16xf32, #tpu.memory_space<vmem>>) attributes {dimension_semantics = [#tpu.dimension_semantics<parallel>, #tpu.dimension_semantics<parallel>], iteration_bounds = array<i64: 2, 1>, scalar_prefetch = 0 : i64, scratch_operands = 0 : i64, tpu.core_type = #tpu.core_type<tc>, window_params = [{transform_indices = @transform_0, window_bounds = array<i64: 1, 4, 16, 16>}, {pipeline_mode = #tpu.pipeline_mode<synchronous>, transform_indices = @transform_1, window_bounds = array<i64: 4, 1, 1>}, {transform_indices = @transform_2, window_bounds = array<i64: 1, 1>}, {transform_indices = @transform_3, window_bounds = array<i64: 1, 4, 16, 16>}]} {
    %c0 = arith.constant 0 : index
    %c0_0 = arith.constant 0 : index
    %c0_1 = arith.constant 0 : index
    %c0_2 = arith.constant 0 : index
    %0 = vector.load %arg2[%c0, %c0_0, %c0_1, %c0_2] : memref<1x4x16x16xf32, #tpu.memory_space<vmem>>, vector<1x4x16x16xf32>
    %1 = vector.shape_cast %0 : vector<1x4x16x16xf32> to vector<4x16x16xf32>
    %c0_3 = arith.constant 0 : index
    %c0_4 = arith.constant 0 : index
    %c0_5 = arith.constant 0 : index
    %2 = vector.load %arg3[%c0_3, %c0_4, %c0_5] : memref<4x1x1xf32, #tpu.memory_space<vmem>>, vector<4x1x1xf32>
    %3 = vector.broadcast %2 : vector<4x1x1xf32> to vector<4x16x16xf32>
    %4 = arith.mulf %1, %3 : vector<4x16x16xf32>
    %cst = arith.constant dense<0.000000e+00> : vector<16x16xf32>
    %5 = vector.multi_reduction <add>, %4, %cst [0] : vector<4x16x16xf32> to vector<16x16xf32>
    %c0_6 = arith.constant 0 : index
    %c0_7 = arith.constant 0 : index
    %6 = memref.load %arg4[%c0_6, %c0_7] : memref<1x1xf32, #tpu.memory_space<smem>>
    %7 = vector.broadcast %6 : f32 to vector<16x16xf32>
    %8 = arith.addf %5, %7 : vector<16x16xf32>
    %9 = vector.shape_cast %8 : vector<16x16xf32> to vector<1x16x16xf32>
    %10 = vector.broadcast %9 : vector<1x16x16xf32> to vector<4x16x16xf32>
    %11 = arith.mulf %1, %10 : vector<4x16x16xf32>
    %c0_8 = arith.constant 0 : index
    %c0_9 = arith.constant 0 : index
    %c0_10 = arith.constant 0 : index
    %c0_11 = arith.constant 0 : index
    %12 = vector.load %arg5[%c0_8, %c0_9, %c0_10, %c0_11] : memref<1x4x16x16xf32, #tpu.memory_space<vmem>>, vector<1x4x16x16xf32>
    %13 = vector.shape_cast %12 : vector<1x4x16x16xf32> to vector<4x16x16xf32>
    %14 = vector.shape_cast %11 : vector<4x16x16xf32> to vector<1x4x16x16xf32>
    tpu.vector_store %arg5[%c0_8, %c0_9, %c0_10, %c0_11], %14 {strides = array<i32>} : memref<1x4x16x16xf32, #tpu.memory_space<vmem>>, vector<1x4x16x16xf32>,
    return
  }
  func.func @transform_0(%arg0: i32, %arg1: i32) -> (i32, i32, i32, i32) {
    %c0_i32 = arith.constant 0 : i32
    %c0_i32_0 = arith.constant 0 : i32
    %c0_i32_1 = arith.constant 0 : i32
    return %arg0, %c0_i32, %arg1, %c0_i32_0 : i32, i32, i32, i32
  }
  func.func @transform_1(%arg0: i32, %arg1: i32) -> (i32, i32, i32) {
    %c0_i32 = arith.constant 0 : i32
    %c0_i32_0 = arith.constant 0 : i32
    %c0_i32_1 = arith.constant 0 : i32
    %c0_i32_2 = arith.constant 0 : i32
    return %c0_i32, %c0_i32_0, %c0_i32_1 : i32, i32, i32
  }
  func.func @transform_2(%arg0: i32, %arg1: i32) -> (i32, i32) {
    %c0_i32 = arith.constant 0 : i32
    %c0_i32_0 = arith.constant 0 : i32
    %c0_i32_1 = arith.constant 0 : i32
    return %c0_i32, %c0_i32_0 : i32, i32
  }
  func.func @transform_3(%arg0: i32, %arg1: i32) -> (i32, i32, i32, i32) {
    %c0_i32 = arith.constant 0 : i32
    %c0_i32_0 = arith.constant 0 : i32
    %c0_i32_1 = arith.constant 0 : i32
    return %arg0, %c0_i32, %arg1, %c0_i32_0 : i32, i32, i32, i32
  }
}

</mosaic_0001>

<llo_original>
// kernel: tpu_custom_call.1
$region0: #{tpu_custom_call.1}
  #allocation0 [shape = 'u32[]', space=smem, size = 0x4, offset = 0x4, fixed_abs, tag = 'smem constant byte address 0x4 - core index']
  #allocation1 [shape = 'u32[144,128]{1,0:T(1,128)}', space=vmem, size = 0x12000, scoped, tag = 'internal scratch']
  #allocation2 [shape = 'f32[1,1]{1,0:T(1,128)S(6)}', space=smem, size = 0x200, scoped, tag = 'scoped memory for tpu_custom_call.1']
  %s0 = inlined_call_operand.hbm [shape: f32[2,4,16,16], index: 0, kind: input, shape index: {}]
  %s1 = inlined_call_operand.vmem [shape: f32[4,1,1], index: 1, kind: input, shape index: {}]
  %s2 = inlined_call_operand.<no memory space> [shape: f32[1,1], index: 2, kind: input, shape index: {}]
  %s3 = inlined_call_operand.hbm [shape: f32[2,4,16,16], index: 3, kind: output, shape index: {}]
  %s4 = sld [smem:[#allocation0]]
  $region49: #{tpu_custom_call.1} parent=0
    _
  %s6 = ssub.s32 1, %s4
  %s7 = scalar_select 0, %s6, %s4
  %8 = sst [smem:[#allocation2]] %s2
  $region1: #{tpu_custom_call.1} parent=0
    #allocation3 [shape = 'u8[65536]{0}', space=vmem, size = 0x10000, scoped, tag = 'input window, operand 0']
    #allocation4 [shape = 's32[2]{0}', space=sflag, size = 0x8, scoped, tag = 'scoped memory for tpu_custom_call.1']
    #allocation5 [shape = 's32[2]{0}', space=sflag, size = 0x8, scoped, tag = 'scoped memory for tpu_custom_call.1']
    #allocation6 [shape = 'u8[65536]{0}', space=vmem, size = 0x10000, scoped, tag = 'output window, operand 0']
    %9 = vsyncpa [#allocation4], 0
    %s10 = scalar_lea.sflag [#allocation4], 1
    %11 = vsyncpa %s10, 0
    %12 = vsyncpa [#allocation5], 0
    %s13 = scalar_lea.sflag [#allocation5], 1
    %14 = vsyncpa %s13, 0
    loop: start=0, step=1, limit=4
    $region2: #{tpu_custom_call.1} parent=1 // loop_pre_header
      _
    $region3: #{tpu_custom_call.1} parent=1 // loop_header
      %s16 = sphi 0, %s20
      %p17 = scmp.ge.s32.totalorder %s16, 4
      %s23 = sphi 0, %s35
      %s24 = sphi 0, %s31
      %s25 = sphi 0, %s23
      %s26 = sphi 0, %s24
      %s27 = sphi 0, %s25
      %s28 = sphi 0, %s26
      %s40 = sphi 0, %s42
      %s43 = sphi 0, %s40
      %s44 = sphi 0, %s43
      %s60 = sphi 0, %s44
      %s64 = sphi 0, %s64
      %s66 = sphi 0, %s64
      %s67 = sphi 0, %s66
      %s81 = sphi 0, %s67
      %s85 = sphi 0, %s85
      %s87 = sphi 0, %s85
      %s88 = sphi 0, %s87
      %s102 = sphi 0, %s88
      %s110 = sphi 0, %s112
      %s113 = sphi 0, %s110
      %s114 = sphi 0, %s113
      %s130 = sphi 0, %s114
    $region4: #{tpu_custom_call.1} parent=1 // loop_header_branch
      %19 = sbr.rel (%p17) target = $region8
    $region5: #{tpu_custom_call.1} parent=1 // loop_body
      %s21 = ssub.s32 %s16, 1
      %s22 = ssub.s32 %s16, 2
      %s29 = sadd.s32 1, %s24
      %p30 = scmp.ge.s32.totalorder %s29, 1
      %s31 = scalar_select %p30, 0, %s29
      %s32 = sadd.s32 1, %s23
      %s33 = scalar_select %p30, %s32, %s23
      %p34 = scmp.ge.s32.totalorder %s33, 2
      %s35 = scalar_select %p34, 0, %s33
      %s36 = ssub.s32 %s23, %s35
      %s37 = ssub.s32 %s24, %s31
      %s38 = sor.u32 %s36, %s37
      %p39 = scmp.eq.s32.totalorder %s38, 0
      %s41 = sadd.s32 %s40, 1
      %s42 = scalar_select %p39, %s40, %s41
      %p45 = pneg %p39
      %p46 = scmp.eq.s32.totalorder %s16, 1
      %p47 = por %p45, %p46
      %p48 = scmp.ne.s32.totalorder %s40, %s43
      %p49 = scmp.eq.s32.totalorder %s16, 0
      %p50 = por %p48, %p49
      %p51 = scmp.ne.s32.totalorder %s40, %s43
      %p52 = scmp.eq.s32.totalorder %s21, 1
      %p53 = por %p51, %p52
      %p54 = scmp.ne.s32.totalorder %s43, %s44
      %p55 = scmp.eq.s32.totalorder %s21, 0
      %p56 = por %p54, %p55
      %p57 = scmp.ne.s32.totalorder %s43, %s44
      %p58 = scmp.eq.s32.totalorder %s22, 1
      %p59 = por %p57, %p58
      %p61 = scmp.ne.s32.totalorder %s44, %s60
      %p62 = scmp.eq.s32.totalorder %s22, 0
      %p63 = por %p61, %p62
      %s65 = sadd.s32 %s64, 1
      %p68 = scmp.eq.s32.totalorder %s16, 1
      %p69 = scmp.ne.s32.totalorder %s64, %s66
      %p70 = scmp.eq.s32.totalorder %s16, 0
      %p71 = por %p69, %p70
      %p72 = scmp.ne.s32.totalorder %s64, %s66
      %p73 = scmp.eq.s32.totalorder %s21, 1
      %p74 = por %p72, %p73
      %p75 = scmp.ne.s32.totalorder %s66, %s67
      %p76 = scmp.eq.s32.totalorder %s21, 0
      %p77 = por %p75, %p76
      %p78 = scmp.ne.s32.totalorder %s66, %s67
      %p79 = scmp.eq.s32.totalorder %s22, 1
      %p80 = por %p78, %p79
      %p82 = scmp.ne.s32.totalorder %s67, %s81
      %p83 = scmp.eq.s32.totalorder %s22, 0
      %p84 = por %p82, %p83
      %s86 = sadd.s32 %s85, 1
      %p89 = scmp.eq.s32.totalorder %s16, 1
      %p90 = scmp.ne.s32.totalorder %s85, %s87
      %p91 = scmp.eq.s32.totalorder %s16, 0
      %p92 = por %p90, %p91
      %p93 = scmp.ne.s32.totalorder %s85, %s87
      %p94 = scmp.eq.s32.totalorder %s21, 1
      %p95 = por %p93, %p94
      %p96 = scmp.ne.s32.totalorder %s87, %s88
      %p97 = scmp.eq.s32.totalorder %s21, 0
      %p98 = por %p96, %p97
      %p99 = scmp.ne.s32.totalorder %s87, %s88
      %p100 = scmp.eq.s32.totalorder %s22, 1
      %p101 = por %p99, %p100
      %p103 = scmp.ne.s32.totalorder %s88, %s102
      %p104 = scmp.eq.s32.totalorder %s22, 0
      %p105 = por %p103, %p104
      %s106 = ssub.s32 %s23, %s35
      %s107 = ssub.s32 %s24, %s31
      %s108 = sor.u32 %s106, %s107
      %p109 = scmp.eq.s32.totalorder %s108, 0
      %s111 = sadd.s32 %s110, 1
      %s112 = scalar_select %p109, %s110, %s111
      %p115 = pneg %p109
      %p116 = scmp.eq.s32.totalorder %s16, 1
      %p117 = por %p115, %p116
      %p118 = scmp.ne.s32.totalorder %s110, %s113
      %p119 = scmp.eq.s32.totalorder %s16, 0
      %p120 = por %p118, %p119
      %p121 = scmp.ne.s32.totalorder %s110, %s113
      %p122 = scmp.eq.s32.totalorder %s21, 1
      %p123 = por %p121, %p122
      %p124 = scmp.ne.s32.totalorder %s113, %s114
      %p125 = scmp.eq.s32.totalorder %s21, 0
      %p126 = por %p124, %p125
      %p127 = scmp.ne.s32.totalorder %s113, %s114
      %p128 = scmp.eq.s32.totalorder %s22, 1
      %p129 = por %p127, %p128
      %p131 = scmp.ne.s32.totalorder %s114, %s130
      %p132 = scmp.eq.s32.totalorder %s22, 0
      %p133 = por %p131, %p132
      %p134 = scmp.le.s32.totalorder 1, %s16
      %p135 = scmp.lt.s32.totalorder %s16, 3
      %p136 = pnand %p134, %p135
      %p137 = pneg %p136
      // Predicated region
      $region9: #{tpu_custom_call.1} parent=5 // pred_check
        _
      $region10: #{tpu_custom_call.1} parent=5 // pred_check_branch
        %139 = sbr.rel (%p136) target = $region12
      $region11: #{tpu_custom_call.1} parent=5 // pred_region
        %s140 = ssub.s32 %s16, 1
        // Predicated region
        $region13: #{tpu_custom_call.1} parent=11 // pred_check
          %p141 = pneg %p77
        $region14: #{tpu_custom_call.1} parent=11 // pred_check_branch
          %143 = sbr.rel (%p141) target = $region16
        $region15: #{tpu_custom_call.1} parent=11 // pred_region
          _
        $region16: #{tpu_custom_call.1} parent=11 // pred_fallthru
          _
        // Predicated region
        $region17: #{tpu_custom_call.1} parent=11 // pred_check
          %p144 = pneg %p98
        $region18: #{tpu_custom_call.1} parent=11 // pred_check_branch
          %146 = sbr.rel (%p144) target = $region20
        $region19: #{tpu_custom_call.1} parent=11 // pred_region
          _
        $region20: #{tpu_custom_call.1} parent=11 // pred_fallthru
          _
      $region12: #{tpu_custom_call.1} parent=5 // pred_fallthru
        _
      %p147 = scmp.lt.s32.totalorder %s16, 2
      // Predicated region
      $region21: #{tpu_custom_call.1} parent=5 // pred_check
        %p148 = pneg %p147
      $region22: #{tpu_custom_call.1} parent=5 // pred_check_branch
        %150 = sbr.rel (%p148) target = $region24
      $region23: #{tpu_custom_call.1} parent=5 // pred_region
        // Predicated region
        $region25: #{tpu_custom_call.1} parent=23 // pred_check
          %p151 = pneg %p50
        $region26: #{tpu_custom_call.1} parent=23 // pred_check_branch
          %153 = sbr.rel (%p151) target = $region28
        $region27: #{tpu_custom_call.1} parent=23 // pred_region
          %s154 = sand.u32 %s40, 1
          %s155 = scalar_lea.sflag [#allocation4], %s154
          %s156 = sand.u32 %s40, 1
          %s157 = smul.addr %s156, 64
          %s158 = scalar_lea.vmem [#allocation3], %s157
          %s159 = smul.u32 2, %s24
          %s161 = ssub.s32 1024, 1024
          %162 = vsyncadd %s155, %s161
          %s163 = smul.addr %s23, 8
          %s164 = sadd.s32 %s159, %s163
          %s165 = smul.addr %s164, 128
          %s166 = scalar_lea.hbm %s0, %s165
          %s167 = sshll.u32 %s158, 4
          %s168 = int_to_ptr.vmem [resolvable:$true] %s167
          %173 = dma.hbm_to_vmem [thread:$0]  %s166, 1024, %s168, %s155, 128, 128, 8
        $region28: #{tpu_custom_call.1} parent=23 // pred_fallthru
          _
      $region24: #{tpu_custom_call.1} parent=5 // pred_fallthru
        _
      %p174 = scmp.le.s32.totalorder 1, %s16
      %p175 = scmp.lt.s32.totalorder %s16, 3
      %p176 = pnand %p174, %p175
      %p177 = pneg %p176
      // Predicated region
      $region29: #{tpu_custom_call.1} parent=5 // pred_check
        _
      $region30: #{tpu_custom_call.1} parent=5 // pred_check_branch
        %179 = sbr.rel (%p176) target = $region32
      $region31: #{tpu_custom_call.1} parent=5 // pred_region
        %s180 = ssub.s32 %s16, 1
        %s181 = sand.u32 %s43, 1
        %s182 = scalar_lea.sflag [#allocation4], %s181
        %s183 = sand.u32 %s43, 1
        %s184 = smul.addr %s183, 64
        %s185 = scalar_lea.vmem [#allocation3], %s184
        // Predicated region
        $region33: #{tpu_custom_call.1} parent=31 // pred_check
          %p186 = pneg %p56
        $region34: #{tpu_custom_call.1} parent=31 // pred_check_branch
          %188 = sbr.rel (%p186) target = $region36
        $region35: #{tpu_custom_call.1} parent=31 // pred_region
          %189 = dma.done %s182, 1024
        $region36: #{tpu_custom_call.1} parent=31 // pred_fallthru
          _
        %s190 = sand.u32 %s43, 1
        %s191 = scalar_lea.sflag [#allocation4], %s190
        %s192 = sand.u32 %s43, 1
        %s193 = smul.addr %s192, 64
        %s194 = scalar_lea.vmem [#allocation3], %s193
        %p195 = pneg %p56
        %p196 = pneg %p53
        %p197 = pneg %p77
        %p198 = pneg %p74
        %p199 = pneg %p98
        %p200 = pneg %p95
        %p201 = pneg %p126
        %p202 = pneg %p123
        %s203 = sand.u32 %s113, 1
        %s204 = scalar_lea.sflag [#allocation5], %s203
        %s205 = sand.u32 %s113, 1
        %s206 = smul.addr %s205, 64
        %s207 = scalar_lea.vmem [#allocation6], %s206
        %s208 = smul.u32 2, %s26
        %s209 = smul.u32 2, %s26
        %v210 = vld [vmem:[%s185] sm:$0xff]
        %v211 = vld [vmem:[%s185 + $0x8] sm:$0xff]
        %v212 = vld [vmem:[%s185 + $0x10] sm:$0xff]
        %v213 = vld [vmem:[%s185 + $0x18] sm:$0xff]
        %v214 = vld [vmem:[%s185 + $0x20] sm:$0xff]
        %v215 = vld [vmem:[%s185 + $0x28] sm:$0xff]
        %v216 = vld [vmem:[%s185 + $0x30] sm:$0xff]
        %v217 = vld [vmem:[%s185 + $0x38] sm:$0xff]
        %v218 = vld [vmem:[%s1] sm:$0x1]
        %v219 = vld [vmem:[%s1 + $0x1] sm:$0x1]
        %v220 = vld [vmem:[%s1 + $0x2] sm:$0x1]
        %v221 = vld [vmem:[%s1 + $0x3] sm:$0x1]
        %v226 = vlaneseq
        %v227 = vshrl.u32 %v226, 7
        %v228 = vsub.s32 0, %v227
        %v229 = vrot.slane %v218, %v228
        %v230 = vlaneseq
        %v231 = vshrl.u32 %v230, 7
        %v232 = vsub.s32 0, %v231
        %v233 = vrot.slane %v219, %v232
        %v234 = vlaneseq
        %v235 = vshrl.u32 %v234, 7
        %v236 = vsub.s32 0, %v235
        %v237 = vrot.slane %v220, %v236
        %v238 = vlaneseq
        %v239 = vshrl.u32 %v238, 7
        %v240 = vsub.s32 0, %v239
        %v241 = vrot.slane %v221, %v240
        %242 = vset.pattern.permute.xlu0 0
        %243 = vperm.xlu0 %242, %v229
        %v244 = vpop.permute.xlu0 %243
        %246 = vset.pattern.permute.xlu0 0
        %247 = vperm.xlu0 %246, %v233
        %v248 = vpop.permute.xlu0 %247
        %250 = vset.pattern.permute.xlu0 0
        %251 = vperm.xlu0 %250, %v237
        %v252 = vpop.permute.xlu0 %251
        %254 = vset.pattern.permute.xlu0 0
        %255 = vperm.xlu0 %254, %v241
        %v256 = vpop.permute.xlu0 %255
        %v258 = vmul.f32 %v210, %v244
        %v259 = vmul.f32 %v211, %v244
        %v260 = vmul.f32 %v212, %v248
        %v261 = vmul.f32 %v213, %v248
        %v262 = vmul.f32 %v214, %v252
        %v263 = vmul.f32 %v215, %v252
        %v264 = vmul.f32 %v216, %v256
        %v265 = vmul.f32 %v217, %v256
        %vm266 = vcmask 130048
        %v267 = vsel %vm266, %v258, 0.0
        %v268 = vsel %vm266, %v260, 0.0
        %v269 = vadd.f32 %v267, %v268
        %v270 = vsel %vm266, %v262, 0.0
        %v271 = vadd.f32 %v269, %v270
        %v272 = vsel %vm266, %v264, 0.0
        %v273 = vadd.f32 %v271, %v272
        %v274 = vsel %vm266, %v259, 0.0
        %v275 = vsel %vm266, %v261, 0.0
        %v276 = vadd.f32 %v274, %v275
        %v277 = vsel %vm266, %v263, 0.0
        %v278 = vadd.f32 %v276, %v277
        %v279 = vsel %vm266, %v265, 0.0
        %v280 = vadd.f32 %v278, %v279
        %s281 = sld [smem:[#allocation2]]
        %v282 = vstv %s281
        %v283 = vadd.f32 %v273, %v282
        %v284 = vadd.f32 %v280, %v282
        %v285 = vmul.f32 %v210, %v283
        %v286 = vmul.f32 %v211, %v284
        %v287 = vmul.f32 %v212, %v283
        %v288 = vmul.f32 %v213, %v284
        %v289 = vmul.f32 %v214, %v283
        %v290 = vmul.f32 %v215, %v284
        %v291 = vmul.f32 %v216, %v283
        %v292 = vmul.f32 %v217, %v284
        %293 = vst.msk [vmem:[%s207] sm:$0xff] %vm266, %v285
        %294 = vst.msk [vmem:[%s207 + $0x8] sm:$0xff] %vm266, %v286
        %295 = vst.msk [vmem:[%s207 + $0x10] sm:$0xff] %vm266, %v287
        %296 = vst.msk [vmem:[%s207 + $0x18] sm:$0xff] %vm266, %v288
        %297 = vst.msk [vmem:[%s207 + $0x20] sm:$0xff] %vm266, %v289
        %298 = vst.msk [vmem:[%s207 + $0x28] sm:$0xff] %vm266, %v290
        %299 = vst.msk [vmem:[%s207 + $0x30] sm:$0xff] %vm266, %v291
        %300 = vst.msk [vmem:[%s207 + $0x38] sm:$0xff] %vm266, %v292
        %s301 = sand.u32 %s113, 1
        %s302 = scalar_lea.sflag [#allocation5], %s301
        %s303 = sand.u32 %s113, 1
        %s304 = smul.addr %s303, 64
        %s305 = scalar_lea.vmem [#allocation6], %s304
        // Predicated region
        $region37: #{tpu_custom_call.1} parent=31 // pred_check
          %p306 = pneg %p123
        $region38: #{tpu_custom_call.1} parent=31 // pred_check_branch
          %308 = sbr.rel (%p306) target = $region40
        $region39: #{tpu_custom_call.1} parent=31 // pred_region
          %s309 = smul.u32 2, %s26
          %s311 = ssub.s32 1024, 1024
          %312 = vsyncadd %s302, %s311
          %s313 = smul.addr %s25, 8
          %s314 = sadd.s32 %s309, %s313
          %s315 = smul.addr %s314, 128
          %s316 = scalar_lea.hbm %s3, %s315
          %s317 = sshll.u32 %s305, 4
          %s318 = int_to_ptr.vmem [resolvable:$true] %s317
          %323 = dma.vmem_to_hbm [thread:$0]  %s318, 1024, %s316, %s302, 128, 128, 8
        $region40: #{tpu_custom_call.1} parent=31 // pred_fallthru
          _
      $region32: #{tpu_custom_call.1} parent=5 // pred_fallthru
        _
      %p324 = scmp.le.s32.totalorder 2, %s16
      // Predicated region
      $region41: #{tpu_custom_call.1} parent=5 // pred_check
        %p325 = pneg %p324
      $region42: #{tpu_custom_call.1} parent=5 // pred_check_branch
        %327 = sbr.rel (%p325) target = $region44
      $region43: #{tpu_custom_call.1} parent=5 // pred_region
        %s328 = ssub.s32 %s16, 2
        // Predicated region
        $region45: #{tpu_custom_call.1} parent=43 // pred_check
          %p329 = pneg %p129
        $region46: #{tpu_custom_call.1} parent=43 // pred_check_branch
          %331 = sbr.rel (%p329) target = $region48
        $region47: #{tpu_custom_call.1} parent=43 // pred_region
          %s332 = sand.u32 %s114, 1
          %s333 = scalar_lea.sflag [#allocation5], %s332
          %s334 = sand.u32 %s114, 1
          %s335 = smul.addr %s334, 64
          %s336 = scalar_lea.vmem [#allocation6], %s335
          %337 = dma.done %s333, 1024
        $region48: #{tpu_custom_call.1} parent=43 // pred_fallthru
          _
      $region44: #{tpu_custom_call.1} parent=5 // pred_fallthru
        _
    $region6: #{tpu_custom_call.1} parent=1 // loop_footer
      %s20 = sadd.s32 1, %s16
    $region7: #{tpu_custom_call.1} parent=1 // loop_footer_branch
      %15 = sbr.rel target = $region3
    $region8: #{tpu_custom_call.1} parent=1 // loop_exit
      _
    %338 = vsyncpa [#allocation4], 1
    %s339 = scalar_lea.sflag [#allocation4], 1
    %340 = vsyncpa %s339, 1
    %341 = vsyncpa [#allocation5], 1
    %s342 = scalar_lea.sflag [#allocation5], 1
    %343 = vsyncpa %s342, 1

</llo_original>
